<compile_context>
chip_gen: v7x
topology: tpu7x:2x2x1
jax: 0.10.0
libtpu: 0.0.40
codegen_flags: <defaults>
</compile_context>

<pallas_src>
import jax
import jax.numpy as jnp
from jax import lax
from jax.experimental import pallas as pl
from jax.experimental.pallas import tpu as pltpu

# ----------------------------- sizes ---------------------------------------
B = 2                  # batch
S = 8                  # sequence length
H = 128                # hidden size (768 in the original module; small here)
NUM_LABELS = 8
NPAD = 128             # lane-dense padded classifier width
VOCAB = 100
TP_OFF = VOCAB         # rows 100..115 : combined (token_type, position) rows
TBL = 128              # packed embedding-table rows (zero padded)


# --------------------------- Pallas kernel ----------------------------------
def _so_fused_kernel(widx_ref, tpidx_ref, pool_sel_ref,
                     tbl_pool_ref, b_pool_ref, w_clsC_ref,
                     tbl_sC_ref, tbl_oC_ref, b_logits_ref,
                     out_ref):
    f32 = jnp.float32
    bf16 = jnp.bfloat16

    # ---- embedding stand-in lookup: one-hot from 2 compares (word, type+pos) ----
    col = lax.broadcasted_iota(jnp.int32, (B * S, TBL), 1)
    onehot = ((col == widx_ref[...]) | (col == tpidx_ref[...])).astype(f32)

    # ---- reassociated pooling: tiny selector contracted with the one-hot first,
    #      so every downstream matmul has only B LHS rows ----
    sel_oh = jnp.dot(pool_sel_ref[...], onehot, preferred_element_type=f32)  # (3B, TBL)
    cls_oh = sel_oh[0:B].astype(bf16)
    s_oh = sel_oh[B:2 * B].astype(bf16)
    o_oh = sel_oh[2 * B:3 * B].astype(bf16)

    # ---- pooler path (tanh blocks pre-fusion): 2 dependent matmuls ----
    pooled = jnp.tanh(
        jnp.dot(cls_oh, tbl_pool_ref[...], preferred_element_type=f32)
        + b_pool_ref[...])                                                   # (B, H) f32
    logits = jnp.dot(pooled.astype(bf16), w_clsC_ref[...],
                     preferred_element_type=f32)                             # (B, NPAD)

    # ---- subject / object paths: fully pre-fused offline (table @ w_s @ w_cS),
    #      one matmul each, off the tanh critical path ----
    logits = logits + jnp.dot(s_oh, tbl_sC_ref[...], preferred_element_type=f32)
    logits = logits + jnp.dot(o_oh, tbl_oC_ref[...], preferred_element_type=f32)

    out_ref[...] = logits + b_logits_ref[...]


def _vmem_spec():
    return pl.BlockSpec(memory_space=pltpu.MemorySpace.VMEM)


# ------------------------------ wrapper -------------------------------------
@jax.jit
def subject_object_forward(input_ids, attention_mask, token_type_ids,
                           subject_positions, object_positions, params):
    del attention_mask  # only the real BERT encoder consumes it
    f32 = jnp.float32

    widx = input_ids.reshape(B * S, 1).astype(jnp.int32)
    # combined (token_type, position) index -> single extra one-hot hit per token
    pos = jnp.arange(S, dtype=jnp.int32)[None, :]
    tpidx = (TP_OFF + token_type_ids.astype(jnp.int32) * S + pos).reshape(B * S, 1)

    # normalized pooling selectors (division guarded against empty masks);
    # static scaffolds (cls row block, block-diag mask) come precomputed.
    spos = subject_positions.astype(f32)
    opos = object_positions.astype(f32)
    s_cnt = jnp.sum(spos, axis=1, keepdims=True)
    o_cnt = jnp.sum(opos, axis=1, keepdims=True)
    s_norm = spos / jnp.where(s_cnt > 0, s_cnt, 1.0)
    o_norm = opos / jnp.where(o_cnt > 0, o_cnt, 1.0)
    bd = params["blockdiag"]                                   # (B, B*S) static
    s_block = jnp.tile(s_norm, (1, B)) * bd
    o_block = jnp.tile(o_norm, (1, B)) * bd
    pool_sel = jnp.concatenate([params["cls_block"], s_block, o_block], axis=0)  # (3B, B*S)

    operands = (widx, tpidx, pool_sel,
                params["tbl_pool"], params["b_pool"], params["w_clsC"],
                params["tbl_sC"], params["tbl_oC"], params["b_logits"])

    out = pl.pallas_call(
        _so_fused_kernel,
        out_shape=jax.ShapeDtypeStruct((B, NPAD), f32),
        in_specs=[_vmem_spec() for _ in operands],
        out_specs=_vmem_spec(),
    )(*operands)
    return out[:, :NUM_LABELS]


# ------------------------------ params --------------------------------------
def init_params(key):
    ks = jax.random.split(key, 7)
    s = 0.02
    word_emb = s * jax.random.normal(ks[0], (VOCAB, H), jnp.float32)
    pos_emb = s * jax.random.normal(ks[1], (S, H), jnp.float32)
    type_emb = s * jax.random.normal(ks[2], (2, H), jnp.float32)
    w_pool = s * jax.random.normal(ks[3], (H, H), jnp.float32)
    b_pool = jnp.zeros((H,), jnp.float32)
    w_s = s * jax.random.normal(ks[4], (H, H), jnp.float32)
    b_s = jnp.full((H,), 0.01, jnp.float32)
    w_o = s * jax.random.normal(ks[5], (H, H), jnp.float32)
    b_o = jnp.full((H,), -0.01, jnp.float32)
    w_c = s * jax.random.normal(ks[6], (3 * H, NUM_LABELS), jnp.float32)  # (in, out)
    b_c = jnp.zeros((NUM_LABELS,), jnp.float32)

    # packed base embedding table: word rows + combined (type, position) rows
    table = jnp.zeros((TBL, H), jnp.float32)
    table = table.at[:VOCAB].set(word_emb)
    tp = (type_emb[:, None, :] + pos_emb[None, :, :]).reshape(2 * S, H)
    table = table.at[TP_OFF:TP_OFF + 2 * S].set(tp)

    # classifier slices padded lane-dense to NPAD
    w_c_cls = jnp.zeros((H, NPAD), jnp.float32).at[:, :NUM_LABELS].set(w_c[0:H])
    w_c_s = jnp.zeros((H, NPAD), jnp.float32).at[:, :NUM_LABELS].set(w_c[H:2 * H])
    w_c_o = jnp.zeros((H, NPAD), jnp.float32).at[:, :NUM_LABELS].set(w_c[2 * H:3 * H])
    b_c_pad = jnp.zeros((NPAD,), jnp.float32).at[:NUM_LABELS].set(b_c)

    # offline pre-fusion (f32), stored bf16 for MXU-native weights
    tbl_pool = (table @ w_pool).astype(jnp.bfloat16)           # (TBL, H)
    tbl_sC = (table @ (w_s @ w_c_s)).astype(jnp.bfloat16)      # (TBL, NPAD)
    tbl_oC = (table @ (w_o @ w_c_o)).astype(jnp.bfloat16)      # (TBL, NPAD)
    w_clsC = w_c_cls.astype(jnp.bfloat16)                      # (H, NPAD)
    b_logits = (b_c_pad + b_s @ w_c_s + b_o @ w_c_o)[None, :]  # (1, NPAD) f32

    # static pooling scaffolds
    colid = jnp.arange(B * S)
    rowid = jnp.arange(B)[:, None]
    blockdiag = ((colid[None, :] // S) == rowid).astype(jnp.float32)   # (B, B*S)
    cls_block = (colid[None, :] == rowid * S).astype(jnp.float32)      # (B, B*S)

    return {
        "tbl_pool": tbl_pool,
        "b_pool": b_pool[None, :],
        "w_clsC": w_clsC,
        "tbl_sC": tbl_sC,
        "tbl_oC": tbl_oC,
        "b_logits": b_logits,
        "blockdiag": blockdiag,
        "cls_block": cls_block,
    }


if __name__ == "__main__":
    key = jax.random.PRNGKey(0)
    pkey, ikey = jax.random.split(key)
    params = init_params(pkey)

    input_ids = jax.random.randint(ikey, (B, S), 0, VOCAB, dtype=jnp.int32)
    attention_mask = jnp.ones((B, S), jnp.int32)
    token_type_ids = jnp.zeros((B, S), jnp.int32)

    # binary position masks: subject tokens at positions 1-2, object at 4-5
    idx = jnp.arange(S)
    subject_positions = jnp.broadcast_to(
        ((idx >= 1) & (idx <= 2)).astype(jnp.float32), (B, S))
    object_positions = jnp.broadcast_to(
        ((idx >= 4) & (idx <= 5)).astype(jnp.float32), (B, S))

    logits = subject_object_forward(input_ids, attention_mask, token_type_ids,
                                    subject_positions, object_positions, params)
    logits = jax.block_until_ready(logits)
    assert logits.shape == (B, NUM_LABELS) and logits.dtype == jnp.float32
    assert bool(jnp.all(jnp.isfinite(logits)))
    print("KERNEL_OK")
</pallas_src>

<mosaic_0001>
module attributes {stable_mosaic.version = 11 : i64} {
  func.func @_so_fused_kernel(%arg0: memref<16x1xi32, #tpu.memory_space<vmem>>, %arg1: memref<16x1xi32, #tpu.memory_space<vmem>>, %arg2: memref<6x16xf32, #tpu.memory_space<vmem>>, %arg3: memref<128x128xbf16, #tpu.memory_space<vmem>>, %arg4: memref<1x128xf32, #tpu.memory_space<vmem>>, %arg5: memref<128x128xbf16, #tpu.memory_space<vmem>>, %arg6: memref<128x128xbf16, #tpu.memory_space<vmem>>, %arg7: memref<128x128xbf16, #tpu.memory_space<vmem>>, %arg8: memref<1x128xf32, #tpu.memory_space<vmem>>, %arg9: memref<2x128xf32, #tpu.memory_space<vmem>>) attributes {dimension_semantics = [], scalar_prefetch = 0 : i64, scratch_operands = 0 : i64, tpu.core_type = #tpu.core_type<tc>} {
    %0 = tpu.iota {dimensions = array<i32: 1>} : vector<16x128xi32>
    %c0 = arith.constant 0 : index
    %c0_0 = arith.constant 0 : index
    %1 = vector.load %arg0[%c0, %c0_0] : memref<16x1xi32, #tpu.memory_space<vmem>>, vector<16x1xi32>
    %2 = vector.broadcast %1 : vector<16x1xi32> to vector<16x128xi32>
    %3 = arith.cmpi eq, %0, %2 : vector<16x128xi32>
    %c0_1 = arith.constant 0 : index
    %c0_2 = arith.constant 0 : index
    %4 = vector.load %arg1[%c0_1, %c0_2] : memref<16x1xi32, #tpu.memory_space<vmem>>, vector<16x1xi32>
    %5 = vector.broadcast %4 : vector<16x1xi32> to vector<16x128xi32>
    %6 = arith.cmpi eq, %0, %5 : vector<16x128xi32>
    %7 = arith.ori %3, %6 : vector<16x128xi1>
    %8 = arith.extui %7 : vector<16x128xi1> to vector<16x128xi32>
    %9 = arith.sitofp %8 : vector<16x128xi32> to vector<16x128xf32>
    %c0_3 = arith.constant 0 : index
    %c0_4 = arith.constant 0 : index
    %10 = vector.load %arg2[%c0_3, %c0_4] : memref<6x16xf32, #tpu.memory_space<vmem>>, vector<6x16xf32>
    %cst = arith.constant dense<0.000000e+00> : vector<6x128xf32>
    %11 = tpu.matmul %10, %9, %cst {dimension_numbers = #tpu.dot_dimension_numbers<[1], [0], [0], [1], [0, 0, 1, 1], [], []>} : vector<6x16xf32>, vector<16x128xf32>, vector<6x128xf32> -> vector<6x128xf32>
    %12 = vector.extract_strided_slice %11 {offsets = [0, 0], sizes = [2, 128], strides = [1, 1]} : vector<6x128xf32> to vector<2x128xf32>
    %13 = arith.truncf %12 : vector<2x128xf32> to vector<2x128xbf16>
    %14 = vector.extract_strided_slice %11 {offsets = [2, 0], sizes = [2, 128], strides = [1, 1]} : vector<6x128xf32> to vector<2x128xf32>
    %15 = arith.truncf %14 : vector<2x128xf32> to vector<2x128xbf16>
    %16 = vector.extract_strided_slice %11 {offsets = [4, 0], sizes = [2, 128], strides = [1, 1]} : vector<6x128xf32> to vector<2x128xf32>
    %17 = arith.truncf %16 : vector<2x128xf32> to vector<2x128xbf16>
    %c0_5 = arith.constant 0 : index
    %c0_6 = arith.constant 0 : index
    %18 = vector.load %arg3[%c0_5, %c0_6] : memref<128x128xbf16, #tpu.memory_space<vmem>>, vector<128x128xbf16>
    %cst_7 = arith.constant dense<0.000000e+00> : vector<2x128xf32>
    %19 = tpu.matmul %13, %18, %cst_7 {dimension_numbers = #tpu.dot_dimension_numbers<[1], [0], [0], [1], [0, 0, 1, 1], [], []>} : vector<2x128xbf16>, vector<128x128xbf16>, vector<2x128xf32> -> vector<2x128xf32>
    %c0_8 = arith.constant 0 : index
    %c0_9 = arith.constant 0 : index
    %20 = vector.load %arg4[%c0_8, %c0_9] : memref<1x128xf32, #tpu.memory_space<vmem>>, vector<1x128xf32>
    %21 = vector.broadcast %20 : vector<1x128xf32> to vector<2x128xf32>
    %22 = arith.addf %19, %21 : vector<2x128xf32>
    %23 = math.tanh %22 : vector<2x128xf32>
    %24 = arith.truncf %23 : vector<2x128xf32> to vector<2x128xbf16>
    %c0_10 = arith.constant 0 : index
    %c0_11 = arith.constant 0 : index
    %25 = vector.load %arg5[%c0_10, %c0_11] : memref<128x128xbf16, #tpu.memory_space<vmem>>, vector<128x128xbf16>
    %cst_12 = arith.constant dense<0.000000e+00> : vector<2x128xf32>
    %26 = tpu.matmul %24, %25, %cst_12 {dimension_numbers = #tpu.dot_dimension_numbers<[1], [0], [0], [1], [0, 0, 1, 1], [], []>} : vector<2x128xbf16>, vector<128x128xbf16>, vector<2x128xf32> -> vector<2x128xf32>
    %c0_13 = arith.constant 0 : index
    %c0_14 = arith.constant 0 : index
    %27 = vector.load %arg6[%c0_13, %c0_14] : memref<128x128xbf16, #tpu.memory_space<vmem>>, vector<128x128xbf16>
    %cst_15 = arith.constant dense<0.000000e+00> : vector<2x128xf32>
    %28 = tpu.matmul %15, %27, %cst_15 {dimension_numbers = #tpu.dot_dimension_numbers<[1], [0], [0], [1], [0, 0, 1, 1], [], []>} : vector<2x128xbf16>, vector<128x128xbf16>, vector<2x128xf32> -> vector<2x128xf32>
    %29 = arith.addf %26, %28 : vector<2x128xf32>
    %c0_16 = arith.constant 0 : index
    %c0_17 = arith.constant 0 : index
    %30 = vector.load %arg7[%c0_16, %c0_17] : memref<128x128xbf16, #tpu.memory_space<vmem>>, vector<128x128xbf16>
    %cst_18 = arith.constant dense<0.000000e+00> : vector<2x128xf32>
    %31 = tpu.matmul %17, %30, %cst_18 {dimension_numbers = #tpu.dot_dimension_numbers<[1], [0], [0], [1], [0, 0, 1, 1], [], []>} : vector<2x128xbf16>, vector<128x128xbf16>, vector<2x128xf32> -> vector<2x128xf32>
    %32 = arith.addf %29, %31 : vector<2x128xf32>
    %c0_19 = arith.constant 0 : index
    %c0_20 = arith.constant 0 : index
    %33 = vector.load %arg8[%c0_19, %c0_20] : memref<1x128xf32, #tpu.memory_space<vmem>>, vector<1x128xf32>
    %34 = vector.broadcast %33 : vector<1x128xf32> to vector<2x128xf32>
    %35 = arith.addf %32, %34 : vector<2x128xf32>
    %c0_21 = arith.constant 0 : index
    %c0_22 = arith.constant 0 : index
    %36 = vector.load %arg9[%c0_21, %c0_22] : memref<2x128xf32, #tpu.memory_space<vmem>>, vector<2x128xf32>
    tpu.vector_store %arg9[%c0_21, %c0_22], %35 {strides = array<i32>} : memref<2x128xf32, #tpu.memory_space<vmem>>, vector<2x128xf32>,
    return
  }
}

</mosaic_0001>

<llo_original>
// kernel: tile.19
$region0: #{tile.19}
  %s0 = inlined_call_operand.vmem [shape: f32[2,2,8], index: 0, kind: input, shape index: {}]
  %s1 = inlined_call_operand.vmem [shape: f32[2,16], index: 1, kind: output, shape index: {}]
  $region1: #{tile.19} parent=0
    #allocation0 [shape = 'u8[4096]{0}', space=vmem, size = 0x1000, scoped, tag = 'scoped mem for output reshape']
    #allocation1 [shape = 'u8[8192]{0}', space=vmem, size = 0x2000, scoped, tag = 'scoped mem for input reshape']
    %s3 = sshllo.u32 0, 2
    %s4 = scalar_lea.vmem %s0, 2
    %v5 = vld [vmem:[%s4] sm:%s3]
    %s6 = scalar_lea.vmem [#allocation1], 8
    %7 = vst [vmem:[%s6] sm:%s3] %v5
    %v8 = vld [vmem:[%s0] sm:%s3]
    %9 = vst [vmem:[#allocation1] sm:%s3] %v8
    %s10 = smov 3
    %v11 = vld [vmem:[#allocation1] ss:$8 sm:%s10]
    %vm12 = vcmask 64512
    %13 = vst.msk [vmem:[#allocation0] sm:$0x3] %vm12, %v11
    %s14 = scalar_lea.vmem [#allocation1], 1
    %s15 = smov 3
    %v16 = vld [vmem:[%s14] ss:$8 sm:%s15]
    %17 = vrot.lane.b32.xlu0 %v16, 8
    %v18 = vpop.permute.xlu0 %17
    %vm19 = vcmask 130112
    %20 = vst.msk [vmem:[#allocation0] sm:$0x3] %vm19, %v18
    %s22 = sshllo.u32 0, 2
    %v24 = vld [vmem:[#allocation0] sm:%s22]
    %s25 = sshllo.u32 0, 2
    %26 = vst [vmem:[%s1] sm:%s25] %v24

// kernel: subject_object_forward.1
$region0: #{subject_object_forward.1}
  #allocation0 [shape = 'u32[]', space=smem, size = 0x4, offset = 0x4, fixed_abs, tag = 'smem constant byte address 0x4 - core index']
  #allocation1 [shape = 'u32[144,128]{1,0:T(1,128)}', space=vmem, size = 0x12000, scoped, tag = 'internal scratch']
  %s0 = inlined_call_operand.vmem [shape: s32[16,1], index: 0, kind: input, shape index: {}]
  %s1 = inlined_call_operand.vmem [shape: s32[16,1], index: 1, kind: input, shape index: {}]
  %s2 = inlined_call_operand.vmem [shape: f32[6,16], index: 2, kind: input, shape index: {}]
  %s3 = inlined_call_operand.vmem [shape: bf16[128,128], index: 3, kind: input, shape index: {}]
  %s4 = inlined_call_operand.hbm [shape: f32[1,128], index: 4, kind: input, shape index: {}]
  %s5 = inlined_call_operand.vmem [shape: bf16[128,128], index: 5, kind: input, shape index: {}]
  %s6 = inlined_call_operand.hbm [shape: bf16[128,128], index: 6, kind: input, shape index: {}]
  %s7 = inlined_call_operand.hbm [shape: bf16[128,128], index: 7, kind: input, shape index: {}]
  %s8 = inlined_call_operand.hbm [shape: f32[1,128], index: 8, kind: input, shape index: {}]
  %s9 = inlined_call_operand.hbm [shape: f32[2,128], index: 9, kind: output, shape index: {}]
  %s10 = sld [smem:[#allocation0]]
  $region62: #{subject_object_forward.1} parent=0
    _
  %s12 = ssub.s32 1, %s10
  %s13 = scalar_select 0, %s12, %s10
  $region1: #{subject_object_forward.1} parent=0
    #allocation2 [shape = 'u8[512]{0}', space=vmem, size = 0x400, scoped, tag = 'input window, operand 4, single buffered']
    #allocation3 [shape = 's32[1]{0}', space=sflag, size = 0x4, scoped, tag = 'scoped memory for subject_object_forward.1']
    #allocation4 [shape = 's32[1]{0}', space=sflag, size = 0x4, scoped, tag = 'scoped memory for subject_object_forward.1']
    #allocation5 [shape = 'u8[32768]{0}', space=vmem, size = 0x8000, scoped, tag = 'input window, operand 6, single buffered']
    #allocation6 [shape = 's32[1]{0}', space=sflag, size = 0x4, scoped, tag = 'scoped memory for subject_object_forward.1']
    #allocation7 [shape = 'u8[32768]{0}', space=vmem, size = 0x8000, scoped, tag = 'input window, operand 7, single buffered']
    #allocation8 [shape = 'u8[512]{0}', space=vmem, size = 0x400, scoped, tag = 'input window, operand 8, single buffered']
    #allocation9 [shape = 's32[1]{0}', space=sflag, size = 0x4, scoped, tag = 'scoped memory for subject_object_forward.1']
    #allocation10 [shape = 'u8[1024]{0}', space=vmem, size = 0x400, scoped, tag = 'output window, operand 0, single buffered']
    %14 = vsyncpa [#allocation3], 0
    %15 = vsyncpa [#allocation6], 0
    %16 = vsyncpa [#allocation9], 0
    %17 = vsyncpa [#allocation4], 0
    // Predicated region
    $region2: #{subject_object_forward.1} parent=1 // pred_check
      _
    $region3: #{subject_object_forward.1} parent=1 // pred_check_branch
      %19 = sbr.rel (0) target = $region5
    $region4: #{subject_object_forward.1} parent=1 // pred_region
      _
    $region5: #{subject_object_forward.1} parent=1 // pred_fallthru
      _
    // Predicated region
    $region6: #{subject_object_forward.1} parent=1 // pred_check
      _
    $region7: #{subject_object_forward.1} parent=1 // pred_check_branch
      %21 = sbr.rel (0) target = $region9
    $region8: #{subject_object_forward.1} parent=1 // pred_region
      _
    $region9: #{subject_object_forward.1} parent=1 // pred_fallthru
      _
    // Predicated region
    $region10: #{subject_object_forward.1} parent=1 // pred_check
      _
    $region11: #{subject_object_forward.1} parent=1 // pred_check_branch
      %23 = sbr.rel (0) target = $region13
    $region12: #{subject_object_forward.1} parent=1 // pred_region
      _
    $region13: #{subject_object_forward.1} parent=1 // pred_fallthru
      _
    // Predicated region
    $region14: #{subject_object_forward.1} parent=1 // pred_check
      _
    $region15: #{subject_object_forward.1} parent=1 // pred_check_branch
      %25 = sbr.rel (0) target = $region17
    $region16: #{subject_object_forward.1} parent=1 // pred_region
      _
    $region17: #{subject_object_forward.1} parent=1 // pred_fallthru
      _
    // Predicated region
    $region18: #{subject_object_forward.1} parent=1 // pred_check
      _
    $region19: #{subject_object_forward.1} parent=1 // pred_check_branch
      %27 = sbr.rel (0) target = $region21
    $region20: #{subject_object_forward.1} parent=1 // pred_region
      %s29 = ssub.s32 16, 16
      %30 = vsyncadd [#allocation3], %s29
      %s32 = sshll.u32 [#allocation2], 4
      %s33 = int_to_ptr.vmem [resolvable:$true] %s32
      %35 = dma.hbm_to_vmem [thread:$0]  %s4, 16, %s33, [#allocation3]
    $region21: #{subject_object_forward.1} parent=1 // pred_fallthru
      _
    // Predicated region
    $region22: #{subject_object_forward.1} parent=1 // pred_check
      _
    $region23: #{subject_object_forward.1} parent=1 // pred_check_branch
      %37 = sbr.rel (0) target = $region25
    $region24: #{subject_object_forward.1} parent=1 // pred_region
      _
    $region25: #{subject_object_forward.1} parent=1 // pred_fallthru
      _
    // Predicated region
    $region26: #{subject_object_forward.1} parent=1 // pred_check
      _
    $region27: #{subject_object_forward.1} parent=1 // pred_check_branch
      %39 = sbr.rel (0) target = $region29
    $region28: #{subject_object_forward.1} parent=1 // pred_region
      %s41 = ssub.s32 1024, 1024
      %42 = vsyncadd [#allocation6], %s41
      %s43 = sshll.u32 [#allocation5], 4
      %s44 = int_to_ptr.vmem [resolvable:$true] %s43
      %49 = dma.hbm_to_vmem [thread:$0]  %s6, 1024, %s44, [#allocation6], 64, 64, 4
    $region29: #{subject_object_forward.1} parent=1 // pred_fallthru
      _
    // Predicated region
    $region30: #{subject_object_forward.1} parent=1 // pred_check
      _
    $region31: #{subject_object_forward.1} parent=1 // pred_check_branch
      %51 = sbr.rel (0) target = $region33
    $region32: #{subject_object_forward.1} parent=1 // pred_region
      %s53 = ssub.s32 1024, 1024
      %54 = vsyncadd [#allocation6], %s53
      %s55 = sshll.u32 [#allocation7], 4
      %s56 = int_to_ptr.vmem [resolvable:$true] %s55
      %61 = dma.hbm_to_vmem [thread:$0]  %s7, 1024, %s56, [#allocation6], 64, 64, 4
    $region33: #{subject_object_forward.1} parent=1 // pred_fallthru
      _
    // Predicated region
    $region34: #{subject_object_forward.1} parent=1 // pred_check
      _
    $region35: #{subject_object_forward.1} parent=1 // pred_check_branch
      %63 = sbr.rel (0) target = $region37
    $region36: #{subject_object_forward.1} parent=1 // pred_region
      %s65 = ssub.s32 16, 16
      %66 = vsyncadd [#allocation9], %s65
      %s68 = sshll.u32 [#allocation8], 4
      %s69 = int_to_ptr.vmem [resolvable:$true] %s68
      %71 = dma.hbm_to_vmem [thread:$0]  %s8, 16, %s69, [#allocation9]
    $region37: #{subject_object_forward.1} parent=1 // pred_fallthru
      _
    // Predicated region
    $region38: #{subject_object_forward.1} parent=1 // pred_check
      _
    $region39: #{subject_object_forward.1} parent=1 // pred_check_branch
      %73 = sbr.rel (0) target = $region41
    $region40: #{subject_object_forward.1} parent=1 // pred_region
      %74 = dma.done [#allocation3], 16
    $region41: #{subject_object_forward.1} parent=1 // pred_fallthru
      _
    // Predicated region
    $region42: #{subject_object_forward.1} parent=1 // pred_check
      _
    $region43: #{subject_object_forward.1} parent=1 // pred_check_branch
      %76 = sbr.rel (0) target = $region45
    $region44: #{subject_object_forward.1} parent=1 // pred_region
      %77 = dma.done [#allocation6], 1024
    $region45: #{subject_object_forward.1} parent=1 // pred_fallthru
      _
    // Predicated region
    $region46: #{subject_object_forward.1} parent=1 // pred_check
      _
    $region47: #{subject_object_forward.1} parent=1 // pred_check_branch
      %79 = sbr.rel (0) target = $region49
    $region48: #{subject_object_forward.1} parent=1 // pred_region
      %80 = dma.done [#allocation6], 1024
    $region49: #{subject_object_forward.1} parent=1 // pred_fallthru
      _
    // Predicated region
    $region50: #{subject_object_forward.1} parent=1 // pred_check
      _
    $region51: #{subject_object_forward.1} parent=1 // pred_check_branch
      %82 = sbr.rel (0) target = $region53
    $region52: #{subject_object_forward.1} parent=1 // pred_region
      %83 = dma.done [#allocation9], 16
    $region53: #{subject_object_forward.1} parent=1 // pred_fallthru
      _
    %v85 = vlaneseq
    %v86 = vand.u32 %v85, 127
    %v87 = vld [vmem:[%s0] sm:$0xff]
    %v88 = vld [vmem:[%s0 + $0x8] sm:$0xff]
    %89 = vset.pattern.permute.xlu0 0
    %90 = vperm.xlu0 %89, %v87
    %v91 = vpop.permute.xlu0 %90
    %92 = vset.pattern.permute.xlu0 0
    %93 = vperm.xlu0 %92, %v88
    %v94 = vpop.permute.xlu0 %93
    %vm95 = vcmp.eq.s32.totalorder %v86, %v91
    %vm96 = vcmp.eq.s32.totalorder %v86, %v94
    %v97 = vld [vmem:[%s1] sm:$0xff]
    %v98 = vld [vmem:[%s1 + $0x8] sm:$0xff]
    %99 = vset.pattern.permute.xlu0 0
    %100 = vperm.xlu0 %99, %v97
    %v101 = vpop.permute.xlu0 %100
    %102 = vset.pattern.permute.xlu0 0
    %103 = vperm.xlu0 %102, %v98
    %v104 = vpop.permute.xlu0 %103
    %vm105 = vcmp.eq.s32.totalorder %v86, %v101
    %vm106 = vcmp.eq.s32.totalorder %v86, %v104
    %vm107 = vmor %vm95, %vm105
    %vm108 = vmor %vm96, %vm106
    %v109 = vsel %vm107, 1, 0
    %v110 = vsel %vm108, 1, 0
    %v111 = vcvt.s32.f32 %v109
    %v112 = vcvt.s32.f32 %v110
    %v113 = vld [vmem:[%s2] sm:$0x3f]
    %vm114 = vcmask 130048
    %v116 = vsel %vm114, %v113, 0
    %118 = vmatprep.subr.mxu0 0.0
    %119 = vmatpush1.msra.mxu0 %v111
    %120 = vmatprep.subr.mxu0 0.0
    %121 = vmatpush1.msra.mxu0 %v112
    %122 = vmatprep.subr.mxu0 0.0
    %123 = vmatpush1.msra.mxu0 0.0
    %124 = vmatprep.subr.mxu0 0.0
    %125 = vmatpush1.msra.mxu0 0.0
    %126 = vmatprep.subr.mxu0 0.0
    %127 = vmatpush1.msra.mxu0 0.0
    %128 = vmatprep.subr.mxu0 0.0
    %129 = vmatpush1.msra.mxu0 0.0
    %130 = vmatprep.subr.mxu0 0.0
    %131 = vmatpush1.msra.mxu0 0.0
    %132 = vmatprep.subr.mxu0 0.0
    %133 = vmatpush1.msra.mxu0 0.0
    %134 = vmatprep.subr.mxu0 0.0
    %135 = vmatpush1.msra.mxu0 0.0
    %136 = vmatprep.subr.mxu0 0.0
    %137 = vmatpush1.msra.mxu0 0.0
    %138 = vmatprep.subr.mxu0 0.0
    %139 = vmatpush1.msra.mxu0 0.0
    %140 = vmatprep.subr.mxu0 0.0
    %141 = vmatpush1.msra.mxu0 0.0
    %142 = vmatprep.subr.mxu0 0.0
    %143 = vmatpush1.msra.mxu0 0.0
    %144 = vmatprep.subr.mxu0 0.0
    %145 = vmatpush1.msra.mxu0 0.0
    %146 = vmatprep.subr.mxu0 0.0
    %147 = vmatpush1.msra.mxu0 0.0
    %148 = vmatprep.subr.mxu0 0.0
    %149 = vmatpush1.msra.mxu0 0.0
    %150 = vmatprep.subr.mxu0 0.0
    %151 = vmatpush1.msra.mxu0 0.0
    %152 = vmatprep.subr.mxu0 0.0
    %153 = vmatpush1.msra.mxu0 0.0
    %154 = vmatprep.subr.mxu0 0.0
    %155 = vmatpush1.msra.mxu0 0.0
    %156 = vmatprep.subr.mxu0 0.0
    %157 = vmatpush1.msra.mxu0 0.0
    %158 = vmatprep.subr.mxu0 0.0
    %159 = vmatpush1.msra.mxu0 0.0
    %160 = vmatprep.subr.mxu0 0.0
    %161 = vmatpush1.msra.mxu0 0.0
    %162 = vmatprep.subr.mxu0 0.0
    %163 = vmatpush1.msra.mxu0 0.0
    %164 = vmatprep.subr.mxu0 0.0
    %165 = vmatpush1.msra.mxu0 0.0
    %166 = vmatprep.subr.mxu0 0.0
    %167 = vmatpush1.msra.mxu0 0.0
    %168 = vmatprep.subr.mxu0 0.0
    %169 = vmatpush1.msra.mxu0 0.0
    %170 = vmatprep.subr.mxu0 0.0
    %171 = vmatpush1.msra.mxu0 0.0
    %172 = vmatprep.subr.mxu0 0.0
    %173 = vmatpush1.msra.mxu0 0.0
    %174 = vmatprep.subr.mxu0 0.0
    %175 = vmatpush1.msra.mxu0 0.0
    %176 = vmatprep.subr.mxu0 0.0
    %177 = vmatpush1.msra.mxu0 0.0
    %178 = vmatprep.subr.mxu0 0.0
    %179 = vmatpush1.msra.mxu0 0.0
    %180 = vmatprep.subr.mxu0 0.0
    %181 = vmatpush1.msra.mxu0 0.0
    %182 = vmatprep.mubr.f32.mxu0 0.0
    %183 = vmatmul.mubr.f32.gmra.mrb[0].mxu0 %v116
    %v184 = vpop.f32.mrb[0].mxu0
    %v185 = vadd.f32 0.0, %v184
    %v186 = vpop.f32.mrb[0].mxu0
    %187 = vdwg.mxu0
    %v188 = vpack.c.bf16 %v185, %v185
    %v189 = vld [vmem:[%s3] sm:$0xf]
    %v190 = vld [vmem:[%s3 + $0x4] sm:$0xf]
    %v191 = vld [vmem:[%s3 + $0x8] sm:$0xf]
    %v192 = vld [vmem:[%s3 + $0xc] sm:$0xf]
    %v193 = vld [vmem:[%s3 + $0x10] sm:$0xf]
    %v194 = vld [vmem:[%s3 + $0x14] sm:$0xf]
    %v195 = vld [vmem:[%s3 + $0x18] sm:$0xf]
    %v196 = vld [vmem:[%s3 + $0x1c] sm:$0xf]
    %v197 = vld [vmem:[%s3 + $0x20] sm:$0xf]
    %v198 = vld [vmem:[%s3 + $0x24] sm:$0xf]
    %v199 = vld [vmem:[%s3 + $0x28] sm:$0xf]
    %v200 = vld [vmem:[%s3 + $0x2c] sm:$0xf]
    %v201 = vld [vmem:[%s3 + $0x30] sm:$0xf]
    %v202 = vld [vmem:[%s3 + $0x34] sm:$0xf]
    %v203 = vld [vmem:[%s3 + $0x38] sm:$0xf]
    %v204 = vld [vmem:[%s3 + $0x3c] sm:$0xf]
    %v205 = vld [vmem:[#allocation2] sm:$0x1]
    %v207 = vlaneseq
    %v208 = vshrl.u32 %v207, 7
    %v209 = vsub.s32 0, %v208
    %v210 = vrot.slane %v205, %v209
    %v228 = vunpack.c.l.b16 %v189
    %v229 = vunpack.c.l.b16 %v190
    %v230 = vunpack.c.l.b16 %v191
    %v231 = vunpack.c.l.b16 %v192
    %v232 = vunpack.c.l.b16 %v193
    %v233 = vunpack.c.l.b16 %v194
    %v234 = vunpack.c.l.b16 %v195
    %v235 = vunpack.c.l.b16 %v196
    %v236 = vunpack.c.l.b16 %v197
    %v237 = vunpack.c.l.b16 %v198
    %v238 = vunpack.c.l.b16 %v199
    %v239 = vunpack.c.l.b16 %v200
    %v240 = vunpack.c.l.b16 %v201
    %v241 = vunpack.c.l.b16 %v202
    %v242 = vunpack.c.l.b16 %v203
    %v243 = vunpack.c.l.b16 %v204
    %v244 = vpack.c.b16 %v229, %v228
    %v245 = vpack.c.b16 %v231, %v230
    %v246 = vpack.c.b16 %v233, %v232
    %v247 = vpack.c.b16 %v235, %v234
    %v248 = vpack.c.b16 %v237, %v236
    %v249 = vpack.c.b16 %v239, %v238
    %v250 = vpack.c.b16 %v241, %v240
    %v251 = vpack.c.b16 %v243, %v242
    %260 = vmatprep.subr.bf16.mxu0 0
    %261 = vmatpush1.bf16.msra.mxu0 %v244
    %262 = vmatprep.subr.bf16.mxu0 0
    %263 = vmatpush1.bf16.msra.mxu0 %v245
    %264 = vmatprep.subr.bf16.mxu0 0
    %265 = vmatpush1.bf16.msra.mxu0 %v246
    %266 = vmatprep.subr.bf16.mxu0 0
    %267 = vmatpush1.bf16.msra.mxu0 %v247
    %268 = vmatprep.subr.bf16.mxu0 0
    %269 = vmatpush1.bf16.msra.mxu0 %v248
    %270 = vmatprep.subr.bf16.mxu0 0
    %271 = vmatpush1.bf16.msra.mxu0 %v249
    %272 = vmatprep.subr.bf16.mxu0 0
    %273 = vmatpush1.bf16.msra.mxu0 %v250
    %274 = vmatprep.subr.bf16.mxu0 0
    %275 = vmatpush1.bf16.msra.mxu0 %v251
    %276 = vmatprep.subr.bf16.mxu0 0
    %277 = vmatpush1.bf16.msra.mxu0 0
    %278 = vmatprep.subr.bf16.mxu0 0
    %279 = vmatpush1.bf16.msra.mxu0 0
    %280 = vmatprep.subr.bf16.mxu0 0
    %281 = vmatpush1.bf16.msra.mxu0 0
    %282 = vmatprep.subr.bf16.mxu0 0
    %283 = vmatpush1.bf16.msra.mxu0 0
    %284 = vmatprep.subr.bf16.mxu0 0
    %285 = vmatpush1.bf16.msra.mxu0 0
    %286 = vmatprep.subr.bf16.mxu0 0
    %287 = vmatpush1.bf16.msra.mxu0 0
    %288 = vmatprep.subr.bf16.mxu0 0
    %289 = vmatpush1.bf16.msra.mxu0 0
    %290 = vmatprep.subr.bf16.mxu0 0
    %291 = vmatpush1.bf16.msra.mxu0 0
    %292 = vmatprep.mubr.bf16.mxu0 0
    %293 = vmatmul.mubr.bf16.gmra.mrb[0].mxu0 %v188
    %v294 = vpop.f32.mrb[0].mxu0
    %v295 = vadd.f32 %v210, %v294
    %v296 = vpop.f32.mrb[0].mxu0
    %v297 = vpop.f32.mrb[0].mxu0
    %v298 = vpop.f32.mrb[0].mxu0
    %299 = vdwg.mxu0
    %v300 = vtanh.pop %v295
    %v301 = vpack.c.bf16 %v300, %v300
    %v302 = vld [vmem:[%s5] sm:$0xf]
    %v303 = vld [vmem:[%s5 + $0x4] sm:$0xf]
    %v304 = vld [vmem:[%s5 + $0x8] sm:$0xf]
    %v305 = vld [vmem:[%s5 + $0xc] sm:$0xf]
    %v306 = vld [vmem:[%s5 + $0x10] sm:$0xf]
    %v307 = vld [vmem:[%s5 + $0x14] sm:$0xf]
    %v308 = vld [vmem:[%s5 + $0x18] sm:$0xf]
    %v309 = vld [vmem:[%s5 + $0x1c] sm:$0xf]
    %v310 = vld [vmem:[%s5 + $0x20] sm:$0xf]
    %v311 = vld [vmem:[%s5 + $0x24] sm:$0xf]
    %v312 = vld [vmem:[%s5 + $0x28] sm:$0xf]
    %v313 = vld [vmem:[%s5 + $0x2c] sm:$0xf]
    %v314 = vld [vmem:[%s5 + $0x30] sm:$0xf]
    %v315 = vld [vmem:[%s5 + $0x34] sm:$0xf]
    %v316 = vld [vmem:[%s5 + $0x38] sm:$0xf]
    %v317 = vld [vmem:[%s5 + $0x3c] sm:$0xf]
    %v318 = vld [vmem:[#allocation5] sm:$0xf]
    %v319 = vld [vmem:[#allocation5 + $0x4] sm:$0xf]
    %v320 = vld [vmem:[#allocation5 + $0x8] sm:$0xf]
    %v321 = vld [vmem:[#allocation5 + $0xc] sm:$0xf]
    %v322 = vld [vmem:[#allocation5 + $0x10] sm:$0xf]
    %v323 = vld [vmem:[#allocation5 + $0x14] sm:$0xf]
    %v324 = vld [vmem:[#allocation5 + $0x18] sm:$0xf]
    %v325 = vld [vmem:[#allocation5 + $0x1c] sm:$0xf]
    %v326 = vld [vmem:[#allocation5 + $0x20] sm:$0xf]
    %v327 = vld [vmem:[#allocation5 + $0x24] sm:$0xf]
    %v328 = vld [vmem:[#allocation5 + $0x28] sm:$0xf]
    %v329 = vld [vmem:[#allocation5 + $0x2c] sm:$0xf]
    %v330 = vld [vmem:[#allocation5 + $0x30] sm:$0xf]
    %v331 = vld [vmem:[#allocation5 + $0x34] sm:$0xf]
    %v332 = vld [vmem:[#allocation5 + $0x38] sm:$0xf]
    %v333 = vld [vmem:[#allocation5 + $0x3c] sm:$0xf]
    %v335 = vrot.slane %v188, 1
    %v353 = vunpack.c.l.b16 %v318
    %v354 = vunpack.c.l.b16 %v319
    %v355 = vunpack.c.l.b16 %v320
    %v356 = vunpack.c.l.b16 %v321
    %v357 = vunpack.c.l.b16 %v322
    %v358 = vunpack.c.l.b16 %v323
    %v359 = vunpack.c.l.b16 %v324
    %v360 = vunpack.c.l.b16 %v325
    %v361 = vunpack.c.l.b16 %v326
    %v362 = vunpack.c.l.b16 %v327
    %v363 = vunpack.c.l.b16 %v328
    %v364 = vunpack.c.l.b16 %v329
    %v365 = vunpack.c.l.b16 %v330
    %v366 = vunpack.c.l.b16 %v331
    %v367 = vunpack.c.l.b16 %v332
    %v368 = vunpack.c.l.b16 %v333
    %v369 = vpack.c.b16 %v354, %v353
    %v370 = vpack.c.b16 %v356, %v355
    %v371 = vpack.c.b16 %v358, %v357
    %v372 = vpack.c.b16 %v360, %v359
    %v373 = vpack.c.b16 %v362, %v361
    %v374 = vpack.c.b16 %v364, %v363
    %v375 = vpack.c.b16 %v366, %v365
    %v376 = vpack.c.b16 %v368, %v367
    %385 = vmatprep.subr.bf16.mxu0 0
    %386 = vmatpush1.bf16.msra.mxu0 %v369
    %387 = vmatprep.subr.bf16.mxu0 0
    %388 = vmatpush1.bf16.msra.mxu0 %v370
    %389 = vmatprep.subr.bf16.mxu0 0
    %390 = vmatpush1.bf16.msra.mxu0 %v371
    %391 = vmatprep.subr.bf16.mxu0 0
    %392 = vmatpush1.bf16.msra.mxu0 %v372
    %393 = vmatprep.subr.bf16.mxu0 0
    %394 = vmatpush1.bf16.msra.mxu0 %v373
    %395 = vmatprep.subr.bf16.mxu0 0
    %396 = vmatpush1.bf16.msra.mxu0 %v374
    %397 = vmatprep.subr.bf16.mxu0 0
    %398 = vmatpush1.bf16.msra.mxu0 %v375
    %399 = vmatprep.subr.bf16.mxu0 0
    %400 = vmatpush1.bf16.msra.mxu0 %v376
    %401 = vmatprep.subr.bf16.mxu0 0
    %402 = vmatpush1.bf16.msra.mxu0 0
    %403 = vmatprep.subr.bf16.mxu0 0
    %404 = vmatpush1.bf16.msra.mxu0 0
    %405 = vmatprep.subr.bf16.mxu0 0
    %406 = vmatpush1.bf16.msra.mxu0 0
    %407 = vmatprep.subr.bf16.mxu0 0
    %408 = vmatpush1.bf16.msra.mxu0 0
    %409 = vmatprep.subr.bf16.mxu0 0
    %410 = vmatpush1.bf16.msra.mxu0 0
    %411 = vmatprep.subr.bf16.mxu0 0
    %412 = vmatpush1.bf16.msra.mxu0 0
    %413 = vmatprep.subr.bf16.mxu0 0
    %414 = vmatpush1.bf16.msra.mxu0 0
    %415 = vmatprep.subr.bf16.mxu0 0
    %416 = vmatpush1.bf16.msra.mxu0 0
    %417 = vmatprep.mubr.bf16.mxu0 0
    %418 = vmatmul.mubr.bf16.gmra.mrb[0].mxu0 %v335
    %v419 = vpop.f32.mrb[0].mxu0
    %v420 = vadd.f32 0.0, %v419
    %v421 = vpop.f32.mrb[0].mxu0
    %v422 = vpop.f32.mrb[0].mxu0
    %v423 = vpop.f32.mrb[0].mxu0
    %424 = vdwg.mxu0
    %v441 = vunpack.c.l.b16 %v302
    %v442 = vunpack.c.l.b16 %v303
    %v443 = vunpack.c.l.b16 %v304
    %v444 = vunpack.c.l.b16 %v305
    %v445 = vunpack.c.l.b16 %v306
    %v446 = vunpack.c.l.b16 %v307
    %v447 = vunpack.c.l.b16 %v308
    %v448 = vunpack.c.l.b16 %v309
    %v449 = vunpack.c.l.b16 %v310
    %v450 = vunpack.c.l.b16 %v311
    %v451 = vunpack.c.l.b16 %v312
    %v452 = vunpack.c.l.b16 %v313
    %v453 = vunpack.c.l.b16 %v314
    %v454 = vunpack.c.l.b16 %v315
    %v455 = vunpack.c.l.b16 %v316
    %v456 = vunpack.c.l.b16 %v317
    %v457 = vpack.c.b16 %v442, %v441
    %v458 = vpack.c.b16 %v444, %v443
    %v459 = vpack.c.b16 %v446, %v445
    %v460 = vpack.c.b16 %v448, %v447
    %v461 = vpack.c.b16 %v450, %v449
    %v462 = vpack.c.b16 %v452, %v451
    %v463 = vpack.c.b16 %v454, %v453
    %v464 = vpack.c.b16 %v456, %v455
    %473 = vmatprep.subr.bf16.mxu0 0
    %474 = vmatpush1.bf16.msra.mxu0 %v457
    %475 = vmatprep.subr.bf16.mxu0 0
    %476 = vmatpush1.bf16.msra.mxu0 %v458
    %477 = vmatprep.subr.bf16.mxu0 0
    %478 = vmatpush1.bf16.msra.mxu0 %v459
    %479 = vmatprep.subr.bf16.mxu0 0
    %480 = vmatpush1.bf16.msra.mxu0 %v460
    %481 = vmatprep.subr.bf16.mxu0 0
    %482 = vmatpush1.bf16.msra.mxu0 %v461
    %483 = vmatprep.subr.bf16.mxu0 0
    %484 = vmatpush1.bf16.msra.mxu0 %v462
    %485 = vmatprep.subr.bf16.mxu0 0
    %486 = vmatpush1.bf16.msra.mxu0 %v463
    %487 = vmatprep.subr.bf16.mxu0 0
    %488 = vmatpush1.bf16.msra.mxu0 %v464
    %489 = vmatprep.subr.bf16.mxu0 0
    %490 = vmatpush1.bf16.msra.mxu0 0
    %491 = vmatprep.subr.bf16.mxu0 0
    %492 = vmatpush1.bf16.msra.mxu0 0
    %493 = vmatprep.subr.bf16.mxu0 0
    %494 = vmatpush1.bf16.msra.mxu0 0
    %495 = vmatprep.subr.bf16.mxu0 0
    %496 = vmatpush1.bf16.msra.mxu0 0
    %497 = vmatprep.subr.bf16.mxu0 0
    %498 = vmatpush1.bf16.msra.mxu0 0
    %499 = vmatprep.subr.bf16.mxu0 0
    %500 = vmatpush1.bf16.msra.mxu0 0
    %501 = vmatprep.subr.bf16.mxu0 0
    %502 = vmatpush1.bf16.msra.mxu0 0
    %503 = vmatprep.subr.bf16.mxu0 0
    %504 = vmatpush1.bf16.msra.mxu0 0
    %505 = vmatprep.mubr.bf16.mxu0 0
    %506 = vmatmul.mubr.bf16.gmra.mrb[0].mxu0 %v301
    %v507 = vpop.f32.mrb[0].mxu0
    %v508 = vadd.f32 %v420, %v507
    %v509 = vpop.f32.mrb[0].mxu0
    %v510 = vpop.f32.mrb[0].mxu0
    %v511 = vpop.f32.mrb[0].mxu0
    %512 = vdwg.mxu0
    %v513 = vld [vmem:[#allocation7] sm:$0xf]
    %v514 = vld [vmem:[#allocation7 + $0x4] sm:$0xf]
    %v515 = vld [vmem:[#allocation7 + $0x8] sm:$0xf]
    %v516 = vld [vmem:[#allocation7 + $0xc] sm:$0xf]
    %v517 = vld [vmem:[#allocation7 + $0x10] sm:$0xf]
    %v518 = vld [vmem:[#allocation7 + $0x14] sm:$0xf]
    %v519 = vld [vmem:[#allocation7 + $0x18] sm:$0xf]
    %v520 = vld [vmem:[#allocation7 + $0x1c] sm:$0xf]
    %v521 = vld [vmem:[#allocation7 + $0x20] sm:$0xf]
    %v522 = vld [vmem:[#allocation7 + $0x24] sm:$0xf]
    %v523 = vld [vmem:[#allocation7 + $0x28] sm:$0xf]
    %v524 = vld [vmem:[#allocation7 + $0x2c] sm:$0xf]
    %v525 = vld [vmem:[#allocation7 + $0x30] sm:$0xf]
    %v526 = vld [vmem:[#allocation7 + $0x34] sm:$0xf]
    %v527 = vld [vmem:[#allocation7 + $0x38] sm:$0xf]
    %v528 = vld [vmem:[#allocation7 + $0x3c] sm:$0xf]
    %v529 = vrot.slane %v188, 2
    %v547 = vunpack.c.l.b16 %v513
    %v548 = vunpack.c.l.b16 %v514
    %v549 = vunpack.c.l.b16 %v515
    %v550 = vunpack.c.l.b16 %v516
    %v551 = vunpack.c.l.b16 %v517
    %v552 = vunpack.c.l.b16 %v518
    %v553 = vunpack.c.l.b16 %v519
    %v554 = vunpack.c.l.b16 %v520
    %v555 = vunpack.c.l.b16 %v521
    %v556 = vunpack.c.l.b16 %v522
    %v557 = vunpack.c.l.b16 %v523
    %v558 = vunpack.c.l.b16 %v524
    %v559 = vunpack.c.l.b16 %v525
    %v560 = vunpack.c.l.b16 %v526
    %v561 = vunpack.c.l.b16 %v527
    %v562 = vunpack.c.l.b16 %v528
    %v563 = vpack.c.b16 %v548, %v547
    %v564 = vpack.c.b16 %v550, %v549
    %v565 = vpack.c.b16 %v552, %v551
    %v566 = vpack.c.b16 %v554, %v553
    %v567 = vpack.c.b16 %v556, %v555
    %v568 = vpack.c.b16 %v558, %v557
    %v569 = vpack.c.b16 %v560, %v559
    %v570 = vpack.c.b16 %v562, %v561
    %579 = vmatprep.subr.bf16.mxu0 0
    %580 = vmatpush1.bf16.msra.mxu0 %v563
    %581 = vmatprep.subr.bf16.mxu0 0
    %582 = vmatpush1.bf16.msra.mxu0 %v564
    %583 = vmatprep.subr.bf16.mxu0 0
    %584 = vmatpush1.bf16.msra.mxu0 %v565
    %585 = vmatprep.subr.bf16.mxu0 0
    %586 = vmatpush1.bf16.msra.mxu0 %v566
    %587 = vmatprep.subr.bf16.mxu0 0
    %588 = vmatpush1.bf16.msra.mxu0 %v567
    %589 = vmatprep.subr.bf16.mxu0 0
    %590 = vmatpush1.bf16.msra.mxu0 %v568
    %591 = vmatprep.subr.bf16.mxu0 0
    %592 = vmatpush1.bf16.msra.mxu0 %v569
    %593 = vmatprep.subr.bf16.mxu0 0
    %594 = vmatpush1.bf16.msra.mxu0 %v570
    %595 = vmatprep.subr.bf16.mxu0 0
    %596 = vmatpush1.bf16.msra.mxu0 0
    %597 = vmatprep.subr.bf16.mxu0 0
    %598 = vmatpush1.bf16.msra.mxu0 0
    %599 = vmatprep.subr.bf16.mxu0 0
    %600 = vmatpush1.bf16.msra.mxu0 0
    %601 = vmatprep.subr.bf16.mxu0 0
    %602 = vmatpush1.bf16.msra.mxu0 0
    %603 = vmatprep.subr.bf16.mxu0 0
    %604 = vmatpush1.bf16.msra.mxu0 0
    %605 = vmatprep.subr.bf16.mxu0 0
    %606 = vmatpush1.bf16.msra.mxu0 0
    %607 = vmatprep.subr.bf16.mxu0 0
    %608 = vmatpush1.bf16.msra.mxu0 0
    %609 = vmatprep.subr.bf16.mxu0 0
    %610 = vmatpush1.bf16.msra.mxu0 0
    %611 = vmatprep.mubr.bf16.mxu0 0
    %612 = vmatmul.mubr.bf16.gmra.mrb[0].mxu0 %v529
    %v613 = vpop.f32.mrb[0].mxu0
    %v614 = vadd.f32 0.0, %v613
    %v615 = vpop.f32.mrb[0].mxu0
    %v616 = vpop.f32.mrb[0].mxu0
    %v617 = vpop.f32.mrb[0].mxu0
    %618 = vdwg.mxu0
    %v619 = vadd.f32 %v508, %v614
    %v620 = vld [vmem:[#allocation8] sm:$0x1]
    %v622 = vlaneseq
    %v623 = vshrl.u32 %v622, 7
    %v624 = vsub.s32 0, %v623
    %v625 = vrot.slane %v620, %v624
    %v627 = vadd.f32 %v619, %v625
    %628 = vst [vmem:[#allocation10] sm:$0x3] %v627
    // Predicated region
    $region54: #{subject_object_forward.1} parent=1 // pred_check
      _
    $region55: #{subject_object_forward.1} parent=1 // pred_check_branch
      %630 = sbr.rel (0) target = $region57
    $region56: #{subject_object_forward.1} parent=1 // pred_region
      %s632 = ssub.s32 32, 32
      %633 = vsyncadd [#allocation4], %s632
      %s635 = sshll.u32 [#allocation10], 4
      %s636 = int_to_ptr.vmem [resolvable:$true] %s635
      %638 = dma.vmem_to_hbm [thread:$0]  %s636, 32, %s9, [#allocation4]
    $region57: #{subject_object_forward.1} parent=1 // pred_fallthru
      _
    // Predicated region
    $region58: #{subject_object_forward.1} parent=1 // pred_check
      _
    $region59: #{subject_object_forward.1} parent=1 // pred_check_branch
      %640 = sbr.rel (0) target = $region61
    $region60: #{subject_object_forward.1} parent=1 // pred_region
      %641 = dma.done [#allocation4], 32
    $region61: #{subject_object_forward.1} parent=1 // pred_fallthru
      _
    %642 = vsyncpa [#allocation3], 1
    %643 = vsyncpa [#allocation6], 1
    %644 = vsyncpa [#allocation9], 1
    %645 = vsyncpa [#allocation4], 1

</llo_original>
